<compile_context>
chip_gen: v7x
topology: tpu7x:2x2x1
jax: 0.10.0
libtpu: 0.0.40
codegen_flags: <defaults>
</compile_context>

<pallas_src>
import math
import functools

import jax
import jax.numpy as jnp
from jax.experimental import pallas as pl
from jax.experimental.pallas import tpu as pltpu


def _round_up(a, b):
    return ((a + b - 1) // b) * b


def _pick_tile(padded, base, cap):
    """Largest multiple of `base` that divides `padded` and is <= cap."""
    t = min(padded, max(cap, base))
    t -= t % base
    while padded % t:
        t -= base
    return t


def _arc_margin_kernel(flags_ref, x_ref, wn_ref, label_ref, out_ref, *,
                       s, cos_m, sin_m, th, mm, easy_margin):
    j = pl.program_id(0)          # class tile  (outer -> weight tile resident)
    i = pl.program_id(1)          # batch tile  (inner -> only x/label re-DMA'd)
    num_i = pl.num_programs(1)

    # --- normalize x tile, folding the logit scale s into the normalization ---
    x = x_ref[...].astype(jnp.float32)                                   # [TB, D]
    inv_norm = jax.lax.rsqrt(
        jnp.maximum(jnp.sum(x * x, axis=-1, keepdims=True), 1e-24))      # 1/max(||x||,1e-12)
    x_ns = (x * (inv_norm * s)).astype(jnp.bfloat16)

    # --- s * cosine = (s * x_n) @ w_n.T on the MXU (bf16 in, f32 accumulate) ---
    cos_s = jax.lax.dot_general(
        x_ns, wn_ref[...], (((1,), (1,)), ((), ())),
        preferred_element_type=jnp.float32)                              # [TB, TC]

    has_label = flags_ref[j * num_i + i] != 0

    @pl.when(jnp.logical_not(has_label))
    def _():
        # Fast path: no label falls in this tile -> just store the MXU result.
        out_ref[...] = cos_s

    @pl.when(has_label)
    def _():
        tb, tc = cos_s.shape
        col_ids = jax.lax.broadcasted_iota(jnp.int32, (tb, tc), 1) + j * tc
        is_label = col_ids == label_ref[...]                             # [TB, TC]

        # Margin fix-up restricted to the label column: O(TB) vector math.
        cos_lbl = jnp.sum(jnp.where(is_label, cos_s, 0.0),
                          axis=-1, keepdims=True) * (1.0 / s)            # [TB, 1]
        sin_lbl = jnp.sqrt(jnp.maximum(1.0 - cos_lbl * cos_lbl, 0.0))    # clamped: no NaN
        phi_lbl = cos_lbl * cos_m - sin_lbl * sin_m
        if easy_margin:
            phi_lbl = jnp.where(cos_lbl > 0.0, phi_lbl, cos_lbl)
        else:
            phi_lbl = jnp.where(cos_lbl - th > 0.0, phi_lbl, cos_lbl - mm)
        delta_s = (phi_lbl - cos_lbl) * s                                # [TB, 1]

        out_ref[...] = cos_s + jnp.where(is_label, delta_s, 0.0)


@functools.partial(jax.jit,
                   static_argnames=("out_features", "s", "m", "sub", "easy_margin"))
def arc_margin_forward(x, label, weight, *, out_features,
                       s=30.0, m=0.7, sub=1, easy_margin=False):
    """ArcMarginProduct.forward: x [B, D], label [B] int -> [B, out_features]."""
    # TODO(synk): sub > 1 path (view + max over sub-centers) not implemented.
    assert sub == 1, "only sub=1 implemented"
    B, D = x.shape
    C = out_features * sub
    assert weight.shape == (C, D)

    cos_m = math.cos(m)
    sin_m = math.sin(m)
    th = math.cos(math.pi - m)
    mm = math.sin(math.pi - m) * m

    # ---- tile sizes: lane-dense, MXU-aligned, and exactly dividing padded dims ----
    Cp = _round_up(C, 128)                 # bound padding waste to < 128 classes
    TC = _pick_tile(Cp, 128, 2048)         # class tile divides Cp exactly
    Bp = _round_up(B, 8)
    TB = _pick_tile(Bp, 8, 256)            # batch tile divides Bp exactly
    grid_j, grid_i = Cp // TC, Bp // TB

    # ---- one-shot prep in plain JAX (fused under jit): normalize + bf16 + pad ----
    w32 = weight.astype(jnp.float32)
    w_n = (w32 / jnp.maximum(
        jnp.sqrt(jnp.sum(w32 * w32, axis=-1, keepdims=True)), 1e-12)).astype(jnp.bfloat16)
    if Cp != C:
        w_n = jnp.pad(w_n, ((0, Cp - C), (0, 0)))   # zero rows -> cosine 0 -> sliced off

    xp = x
    lbl = label.astype(jnp.int32)
    if Bp != B:
        xp = jnp.pad(xp, ((0, Bp - B), (0, 0)))
        lbl = jnp.pad(lbl, (0, Bp - B), constant_values=-1)   # never matches any class
    lbl2d = lbl.reshape(Bp, 1)

    # Per-(class-tile, batch-tile) "contains a label" flags -> SMEM scalar prefetch.
    lbl_tiles = lbl.reshape(grid_i, TB) // TC                                # class-tile of each label
    hit = (lbl_tiles[None, :, :] ==
           jnp.arange(grid_j, dtype=jnp.int32)[:, None, None]).any(axis=-1)  # [grid_j, grid_i]
    flags = hit.astype(jnp.int32).reshape(-1)                                # flat [grid_j*grid_i]

    # ---- VMEM budget from the actual double-buffered footprint (safe on v7x 64 MiB) ----
    vmem_bytes = 2 * (TC * D * 2 + TB * D * 4 + TB * 4 + TB * TC * 4)
    vmem_limit = min(48 * 1024 * 1024, max(vmem_bytes * 2, 16 * 1024 * 1024))

    kernel = functools.partial(
        _arc_margin_kernel, s=float(s), cos_m=cos_m, sin_m=sin_m, th=th, mm=mm,
        easy_margin=easy_margin)

    out = pl.pallas_call(
        kernel,
        out_shape=jax.ShapeDtypeStruct((Bp, Cp), jnp.float32),
        grid_spec=pltpu.PrefetchScalarGridSpec(
            num_scalar_prefetch=1,
            grid=(grid_j, grid_i),                               # class-outer, batch-inner
            in_specs=[
                pl.BlockSpec((TB, D), lambda j, i, flags: (i, 0)),   # x tile (small, re-streamed)
                pl.BlockSpec((TC, D), lambda j, i, flags: (j, 0)),   # weight tile (resident over inner sweep)
                pl.BlockSpec((TB, 1), lambda j, i, flags: (i, 0)),   # labels
            ],
            out_specs=pl.BlockSpec((TB, TC), lambda j, i, flags: (i, j)),
        ),
        compiler_params=pltpu.CompilerParams(
            dimension_semantics=("parallel", "parallel"),
            vmem_limit_bytes=vmem_limit,
        ),
    )(flags, xp, w_n, lbl2d)

    # Note: callers that can mask padded rows/cols downstream may keep the
    # padded (Bp, Cp) view and skip this slice (extra HBM pass).
    return out[:B, :C]


def _reference_f32(x, label, weight, *, s, m, easy_margin):
    """Exact PyTorch ArcMarginProduct.forward semantics in f32 (sub=1)."""
    x32 = x.astype(jnp.float32)
    w32 = weight.astype(jnp.float32)
    x_n = x32 / jnp.maximum(jnp.linalg.norm(x32, axis=-1, keepdims=True), 1e-12)
    w_n = w32 / jnp.maximum(jnp.linalg.norm(w32, axis=-1, keepdims=True), 1e-12)
    cosine = jnp.dot(x_n, w_n.T, preferred_element_type=jnp.float32)
    sine = jnp.sqrt(jnp.maximum(1.0 - cosine ** 2, 0.0))
    cos_m, sin_m = math.cos(m), math.sin(m)
    th = math.cos(math.pi - m)
    mm = math.sin(math.pi - m) * m
    phi = cosine * cos_m - sine * sin_m
    if easy_margin:
        phi = jnp.where(cosine > 0, phi, cosine)
    else:
        phi = jnp.where(cosine - th > 0, phi, cosine - mm)
    one_hot = jax.nn.one_hot(label, cosine.shape[1], dtype=jnp.float32)
    return (one_hot * phi + (1.0 - one_hot) * cosine) * s


def _reference_mirror(x, label, weight, *, s, m, easy_margin):
    """Mirrors the kernel arithmetic (bf16 operands, s folded into x_n)."""
    cos_m, sin_m = math.cos(m), math.sin(m)
    th = math.cos(math.pi - m)
    mm = math.sin(math.pi - m) * m
    x32 = x.astype(jnp.float32)
    w32 = weight.astype(jnp.float32)
    inv_xn = jax.lax.rsqrt(jnp.maximum(jnp.sum(x32 * x32, -1, keepdims=True), 1e-24))
    xs = (x32 * (inv_xn * s)).astype(jnp.bfloat16)
    wn = (w32 / jnp.maximum(
        jnp.sqrt(jnp.sum(w32 * w32, -1, keepdims=True)), 1e-12)).astype(jnp.bfloat16)
    cos_s = jnp.dot(xs, wn.T, preferred_element_type=jnp.float32)     # s * cosine
    one_hot = jax.nn.one_hot(label, weight.shape[0], dtype=jnp.bool_)
    cos_lbl = jnp.sum(jnp.where(one_hot, cos_s, 0.0), -1, keepdims=True) * (1.0 / s)
    sin_lbl = jnp.sqrt(jnp.maximum(1.0 - cos_lbl * cos_lbl, 0.0))
    phi = cos_lbl * cos_m - sin_lbl * sin_m
    if easy_margin:
        phi = jnp.where(cos_lbl > 0.0, phi, cos_lbl)
    else:
        phi = jnp.where(cos_lbl - th > 0.0, phi, cos_lbl - mm)
    delta = (phi - cos_lbl) * s
    return cos_s + jnp.where(one_hot, delta, 0.0)


if __name__ == "__main__":
    # Module defaults: in_features=128, out_features=200, s=30.0, m=0.7, sub=1
    B, IN_FEAT, OUT_FEAT = 8, 128, 200
    S, M, SUB, EASY = 30.0, 0.7, 1, False

    key = jax.random.PRNGKey(0)
    kx, kw, kl = jax.random.split(key, 3)

    x = jax.random.normal(kx, (B, IN_FEAT), dtype=jnp.float32)

    # Deterministic xavier_uniform_ init for weight (out_features*sub, in_features)
    fan_in, fan_out = IN_FEAT, OUT_FEAT * SUB
    bound = math.sqrt(6.0 / (fan_in + fan_out))
    weight = jax.random.uniform(kw, (OUT_FEAT * SUB, IN_FEAT),
                                minval=-bound, maxval=bound, dtype=jnp.float32)

    label = jax.random.randint(kl, (B,), 0, OUT_FEAT, dtype=jnp.int32)

    out = arc_margin_forward(x, label, weight, out_features=OUT_FEAT,
                             s=S, m=M, sub=SUB, easy_margin=EASY)
    out = jax.block_until_ready(out)

    assert out.shape == (B, OUT_FEAT)
    assert bool(jnp.all(jnp.isfinite(out)))

    # Tight check vs. a reference mirroring the kernel's bf16 / s-folded math.
    ref_mirror = _reference_mirror(x, label, weight, s=S, m=M, easy_margin=EASY)
    assert jnp.allclose(out, ref_mirror, atol=3e-2, rtol=0.0), \
        float(jnp.max(jnp.abs(out - ref_mirror)))

    # Loose sanity check vs. the exact f32 PyTorch-semantics reference
    # (difference bounded by bf16 rounding of the cosine, ~0.13 after s=30).
    ref_f32 = _reference_f32(x, label, weight, s=S, m=M, easy_margin=EASY)
    assert jnp.allclose(out, ref_f32, atol=0.35, rtol=0.0), \
        float(jnp.max(jnp.abs(out - ref_f32)))

    print("KERNEL_OK")
</pallas_src>

<mosaic_0001>
module attributes {stable_mosaic.version = 11 : i64} {
  func.func @_arc_margin_kernel(%arg0: i32, %arg1: i32, %arg2: memref<1xi32, #tpu.memory_space<smem>>, %arg3: memref<8x128xf32, #tpu.memory_space<vmem>>, %arg4: memref<256x128xbf16, #tpu.memory_space<vmem>>, %arg5: memref<8x1xi32, #tpu.memory_space<vmem>>, %arg6: memref<8x256xf32, #tpu.memory_space<vmem>>) attributes {dimension_semantics = [#tpu.dimension_semantics<parallel>, #tpu.dimension_semantics<parallel>], iteration_bounds = array<i64: 1, 1>, scalar_prefetch = 1 : i64, scratch_operands = 0 : i64, tpu.core_type = #tpu.core_type<tc>, window_params = [{transform_indices = @transform_0, window_bounds = array<i64: 8, 128>}, {transform_indices = @transform_1, window_bounds = array<i64: 256, 128>}, {transform_indices = @transform_2, window_bounds = array<i64: 8, 1>}, {transform_indices = @transform_3, window_bounds = array<i64: 8, 256>}]} {
    %c0 = arith.constant 0 : index
    %c0_0 = arith.constant 0 : index
    %0 = vector.load %arg3[%c0, %c0_0] : memref<8x128xf32, #tpu.memory_space<vmem>>, vector<8x128xf32>
    %1 = arith.mulf %0, %0 : vector<8x128xf32>
    %cst = arith.constant dense<0.000000e+00> : vector<8xf32>
    %2 = vector.multi_reduction <add>, %1, %cst [1] : vector<8x128xf32> to vector<8xf32>
    %3 = vector.shape_cast %2 : vector<8xf32> to vector<8x1xf32>
    %cst_1 = arith.constant 1.000000e-24 : f32
    %4 = vector.broadcast %cst_1 : f32 to vector<8x1xf32>
    %5 = arith.maximumf %3, %4 : vector<8x1xf32>
    %6 = math.rsqrt %5 : vector<8x1xf32>
    %cst_2 = arith.constant 3.000000e+01 : f32
    %7 = vector.broadcast %cst_2 : f32 to vector<8x1xf32>
    %8 = arith.mulf %6, %7 : vector<8x1xf32>
    %9 = vector.broadcast %8 : vector<8x1xf32> to vector<8x128xf32>
    %10 = arith.mulf %0, %9 : vector<8x128xf32>
    %11 = arith.truncf %10 : vector<8x128xf32> to vector<8x128xbf16>
    %c0_3 = arith.constant 0 : index
    %c0_4 = arith.constant 0 : index
    %12 = vector.load %arg4[%c0_3, %c0_4] : memref<256x128xbf16, #tpu.memory_space<vmem>>, vector<256x128xbf16>
    %cst_5 = arith.constant dense<0.000000e+00> : vector<8x256xf32>
    %13 = tpu.matmul %11, %12, %cst_5 {dimension_numbers = #tpu.dot_dimension_numbers<[1], [1], [0], [0], [0, 0, 1, 0], [], []>} : vector<8x128xbf16>, vector<256x128xbf16>, vector<8x256xf32> -> vector<8x256xf32>
    %c1_i32 = arith.constant 1 : i32
    %14 = arith.muli %arg0, %c1_i32 : i32
    %15 = arith.addi %14, %arg1 : i32
    %16 = arith.index_cast %15 : i32 to index
    %17 = memref.load %arg2[%16] : memref<1xi32, #tpu.memory_space<smem>>
    %c0_i32 = arith.constant 0 : i32
    %18 = arith.cmpi ne, %17, %c0_i32 : i32
    %true = arith.constant true
    %19 = arith.xori %18, %true : i1
    %20 = arith.extui %19 : i1 to i32
    %c0_i32_6 = arith.constant 0 : i32
    %21 = arith.cmpi ne, %20, %c0_i32_6 : i32
    scf.if %21 {
      %c0_8 = arith.constant 0 : index
      %c0_9 = arith.constant 0 : index
      %24 = vector.load %arg6[%c0_8, %c0_9] : memref<8x256xf32, #tpu.memory_space<vmem>>, vector<8x256xf32>
      tpu.vector_store %arg6[%c0_8, %c0_9], %13 {strides = array<i32>} : memref<8x256xf32, #tpu.memory_space<vmem>>, vector<8x256xf32>,
    } else {
    }
    %22 = arith.extui %18 : i1 to i32
    %c0_i32_7 = arith.constant 0 : i32
    %23 = arith.cmpi ne, %22, %c0_i32_7 : i32
    scf.if %23 {
      %24 = tpu.iota {dimensions = array<i32: 1>} : vector<8x256xi32>
      %c256_i32 = arith.constant 256 : i32
      %25 = arith.muli %arg0, %c256_i32 : i32
      %26 = vector.broadcast %25 : i32 to vector<8x256xi32>
      %27 = arith.addi %24, %26 : vector<8x256xi32>
      %c0_8 = arith.constant 0 : index
      %c0_9 = arith.constant 0 : index
      %28 = vector.load %arg5[%c0_8, %c0_9] : memref<8x1xi32, #tpu.memory_space<vmem>>, vector<8x1xi32>
      %29 = vector.broadcast %28 : vector<8x1xi32> to vector<8x256xi32>
      %30 = arith.cmpi eq, %27, %29 : vector<8x256xi32>
      %cst_10 = arith.constant 0.000000e+00 : f32
      %31 = vector.broadcast %cst_10 : f32 to vector<8x256xf32>
      %32 = arith.select %30, %13, %31 : vector<8x256xi1>, vector<8x256xf32>
      %cst_11 = arith.constant dense<0.000000e+00> : vector<8xf32>
      %33 = vector.multi_reduction <add>, %32, %cst_11 [1] : vector<8x256xf32> to vector<8xf32>
      %34 = vector.shape_cast %33 : vector<8xf32> to vector<8x1xf32>
      %cst_12 = arith.constant 0.0333333351 : f32
      %35 = vector.broadcast %cst_12 : f32 to vector<8x1xf32>
      %36 = arith.mulf %34, %35 : vector<8x1xf32>
      %37 = arith.mulf %36, %36 : vector<8x1xf32>
      %cst_13 = arith.constant 1.000000e+00 : f32
      %38 = vector.broadcast %cst_13 : f32 to vector<8x1xf32>
      %39 = arith.subf %38, %37 : vector<8x1xf32>
      %cst_14 = arith.constant 0.000000e+00 : f32
      %40 = vector.broadcast %cst_14 : f32 to vector<8x1xf32>
      %41 = arith.maximumf %39, %40 : vector<8x1xf32>
      %42 = math.sqrt %41 : vector<8x1xf32>
      %cst_15 = arith.constant 0.764842212 : f32
      %43 = vector.broadcast %cst_15 : f32 to vector<8x1xf32>
      %44 = arith.mulf %36, %43 : vector<8x1xf32>
      %cst_16 = arith.constant 0.644217669 : f32
      %45 = vector.broadcast %cst_16 : f32 to vector<8x1xf32>
      %46 = arith.mulf %42, %45 : vector<8x1xf32>
      %47 = arith.subf %44, %46 : vector<8x1xf32>
      %cst_17 = arith.constant -0.764842212 : f32
      %48 = vector.broadcast %cst_17 : f32 to vector<8x1xf32>
      %49 = arith.subf %36, %48 : vector<8x1xf32>
      %cst_18 = arith.constant 0.000000e+00 : f32
      %50 = vector.broadcast %cst_18 : f32 to vector<8x1xf32>
      %51 = arith.cmpf ogt, %49, %50 : vector<8x1xf32>
      %cst_19 = arith.constant 0.450952381 : f32
      %52 = vector.broadcast %cst_19 : f32 to vector<8x1xf32>
      %53 = arith.subf %36, %52 : vector<8x1xf32>
      %54 = arith.select %51, %47, %53 : vector<8x1xi1>, vector<8x1xf32>
      %55 = arith.subf %54, %36 : vector<8x1xf32>
      %cst_20 = arith.constant 3.000000e+01 : f32
      %56 = vector.broadcast %cst_20 : f32 to vector<8x1xf32>
      %57 = arith.mulf %55, %56 : vector<8x1xf32>
      %cst_21 = arith.constant 0.000000e+00 : f32
      %58 = vector.shape_cast %57 : vector<8x1xf32> to vector<8x1xf32>
      %59 = vector.broadcast %58 : vector<8x1xf32> to vector<8x256xf32>
      %60 = vector.broadcast %cst_21 : f32 to vector<8x256xf32>
      %61 = arith.select %30, %59, %60 : vector<8x256xi1>, vector<8x256xf32>
      %62 = arith.addf %13, %61 : vector<8x256xf32>
      %c0_22 = arith.constant 0 : index
      %c0_23 = arith.constant 0 : index
      %63 = vector.load %arg6[%c0_22, %c0_23] : memref<8x256xf32, #tpu.memory_space<vmem>>, vector<8x256xf32>
      tpu.vector_store %arg6[%c0_22, %c0_23], %62 {strides = array<i32>} : memref<8x256xf32, #tpu.memory_space<vmem>>, vector<8x256xf32>,
    } else {
    }
    return
  }
  func.func @transform_0(%arg0: i32, %arg1: i32, %arg2: memref<1xi32, #tpu.memory_space<smem>>) -> (i32, i32) {
    %c0_i32 = arith.constant 0 : i32
    %c0_i32_0 = arith.constant 0 : i32
    return %arg1, %c0_i32 : i32, i32
  }
  func.func @transform_1(%arg0: i32, %arg1: i32, %arg2: memref<1xi32, #tpu.memory_space<smem>>) -> (i32, i32) {
    %c0_i32 = arith.constant 0 : i32
    %c0_i32_0 = arith.constant 0 : i32
    return %arg0, %c0_i32 : i32, i32
  }
  func.func @transform_2(%arg0: i32, %arg1: i32, %arg2: memref<1xi32, #tpu.memory_space<smem>>) -> (i32, i32) {
    %c0_i32 = arith.constant 0 : i32
    %c0_i32_0 = arith.constant 0 : i32
    return %arg1, %c0_i32 : i32, i32
  }
  func.func @transform_3(%arg0: i32, %arg1: i32, %arg2: memref<1xi32, #tpu.memory_space<smem>>) -> (i32, i32) {
    %c0_i32 = arith.constant 0 : i32
    return %arg1, %arg0 : i32, i32
  }
}

</mosaic_0001>

<llo_original>
// kernel: arc_margin_forward.1
$region0: #{arc_margin_forward.1}
  #allocation0 [shape = 'u32[]', space=smem, size = 0x4, offset = 0x4, fixed_abs, tag = 'smem constant byte address 0x4 - core index']
  #allocation1 [shape = 'u32[144,128]{1,0:T(1,128)}', space=vmem, size = 0x12000, scoped, tag = 'internal scratch']
  #allocation2 [shape = 's32[1]{0}', space=sflag, size = 0x4, scoped, tag = 'scoped memory for arc_margin_forward.1']
  #allocation3 [shape = 's32[1]{0:T(128)S(6)}', space=smem, size = 0x200, scoped, tag = 'prefetched SMEM operand 0']
  %s0 = inlined_call_operand.<no memory space> [shape: s32[1], index: 0, kind: input, shape index: {}]
  %s1 = inlined_call_operand.vmem [shape: f32[8,128], index: 1, kind: input, shape index: {}]
  %s2 = inlined_call_operand.vmem [shape: bf16[256,128], index: 2, kind: input, shape index: {}]
  %s3 = inlined_call_operand.vmem [shape: s32[8,1], index: 3, kind: input, shape index: {}]
  %s4 = inlined_call_operand.hbm [shape: f32[8,256], index: 4, kind: output, shape index: {}]
  %s5 = sld [smem:[#allocation0]]
  $region30: #{arc_margin_forward.1} parent=0
    _
  %s7 = ssub.s32 1, %s5
  %s8 = scalar_select 0, %s7, %s5
  %9 = sst [smem:[#allocation3]] %s0
  $region1: #{arc_margin_forward.1} parent=0
    #allocation4 [shape = 'u8[8192]{0}', space=vmem, size = 0x2000, scoped, tag = 'output window, operand 0, single buffered']
    #allocation5 [shape = 's32[1]{0}', space=sflag, size = 0x4, scoped, tag = 'scoped memory for arc_margin_forward.1']
    %10 = vsyncpa [#allocation5], 0
    // Predicated region
    $region2: #{arc_margin_forward.1} parent=1 // pred_check
      _
    $region3: #{arc_margin_forward.1} parent=1 // pred_check_branch
      %12 = sbr.rel (0) target = $region5
    $region4: #{arc_margin_forward.1} parent=1 // pred_region
      _
    $region5: #{arc_margin_forward.1} parent=1 // pred_fallthru
      _
    // Predicated region
    $region6: #{arc_margin_forward.1} parent=1 // pred_check
      _
    $region7: #{arc_margin_forward.1} parent=1 // pred_check_branch
      %14 = sbr.rel (0) target = $region9
    $region8: #{arc_margin_forward.1} parent=1 // pred_region
      _
    $region9: #{arc_margin_forward.1} parent=1 // pred_fallthru
      _
    // Predicated region
    $region10: #{arc_margin_forward.1} parent=1 // pred_check
      _
    $region11: #{arc_margin_forward.1} parent=1 // pred_check_branch
      %16 = sbr.rel (0) target = $region13
    $region12: #{arc_margin_forward.1} parent=1 // pred_region
      _
    $region13: #{arc_margin_forward.1} parent=1 // pred_fallthru
      _
    %v18 = vld [vmem:[%s1] sm:$0xff]
    %v19 = vmul.f32 %v18, %v18
    %20 = vadd.xlane.f32.xlu0 %v19
    %v21 = vpop.xlane.xlu0 %20
    %v22 = vmax.f32 %v21, 1e-24
    %v23 = vrsqrt.pop %v22
    %v24 = vmul.f32 %v23, 30.0
    %v25 = vmul.f32 %v18, %v24
    %v26 = vpack.c.bf16 %v25, %v25
    %v27 = vld [vmem:[%s2] sm:$0xf]
    %v28 = vld [vmem:[%s2 + $0x4] sm:$0xf]
    %v29 = vld [vmem:[%s2 + $0x8] sm:$0xf]
    %v30 = vld [vmem:[%s2 + $0xc] sm:$0xf]
    %v31 = vld [vmem:[%s2 + $0x10] sm:$0xf]
    %v32 = vld [vmem:[%s2 + $0x14] sm:$0xf]
    %v33 = vld [vmem:[%s2 + $0x18] sm:$0xf]
    %v34 = vld [vmem:[%s2 + $0x1c] sm:$0xf]
    %v35 = vld [vmem:[%s2 + $0x20] sm:$0xf]
    %v36 = vld [vmem:[%s2 + $0x24] sm:$0xf]
    %v37 = vld [vmem:[%s2 + $0x28] sm:$0xf]
    %v38 = vld [vmem:[%s2 + $0x2c] sm:$0xf]
    %v39 = vld [vmem:[%s2 + $0x30] sm:$0xf]
    %v40 = vld [vmem:[%s2 + $0x34] sm:$0xf]
    %v41 = vld [vmem:[%s2 + $0x38] sm:$0xf]
    %v42 = vld [vmem:[%s2 + $0x3c] sm:$0xf]
    %v43 = vld [vmem:[%s2 + $0x40] sm:$0xf]
    %v44 = vld [vmem:[%s2 + $0x44] sm:$0xf]
    %v45 = vld [vmem:[%s2 + $0x48] sm:$0xf]
    %v46 = vld [vmem:[%s2 + $0x4c] sm:$0xf]
    %v47 = vld [vmem:[%s2 + $0x50] sm:$0xf]
    %v48 = vld [vmem:[%s2 + $0x54] sm:$0xf]
    %v49 = vld [vmem:[%s2 + $0x58] sm:$0xf]
    %v50 = vld [vmem:[%s2 + $0x5c] sm:$0xf]
    %v51 = vld [vmem:[%s2 + $0x60] sm:$0xf]
    %v52 = vld [vmem:[%s2 + $0x64] sm:$0xf]
    %v53 = vld [vmem:[%s2 + $0x68] sm:$0xf]
    %v54 = vld [vmem:[%s2 + $0x6c] sm:$0xf]
    %v55 = vld [vmem:[%s2 + $0x70] sm:$0xf]
    %v56 = vld [vmem:[%s2 + $0x74] sm:$0xf]
    %v57 = vld [vmem:[%s2 + $0x78] sm:$0xf]
    %v58 = vld [vmem:[%s2 + $0x7c] sm:$0xf]
    %v91 = vunpack.c.l.b16 %v27
    %v92 = vunpack.c.l.b16 %v28
    %v93 = vunpack.c.l.b16 %v29
    %v94 = vunpack.c.l.b16 %v30
    %v95 = vunpack.c.l.b16 %v31
    %v96 = vunpack.c.l.b16 %v32
    %v97 = vunpack.c.l.b16 %v33
    %v98 = vunpack.c.l.b16 %v34
    %v99 = vunpack.c.l.b16 %v35
    %v100 = vunpack.c.l.b16 %v36
    %v101 = vunpack.c.l.b16 %v37
    %v102 = vunpack.c.l.b16 %v38
    %v103 = vunpack.c.l.b16 %v39
    %v104 = vunpack.c.l.b16 %v40
    %v105 = vunpack.c.l.b16 %v41
    %v106 = vunpack.c.l.b16 %v42
    %v107 = vunpack.c.l.b16 %v43
    %v108 = vunpack.c.l.b16 %v44
    %v109 = vunpack.c.l.b16 %v45
    %v110 = vunpack.c.l.b16 %v46
    %v111 = vunpack.c.l.b16 %v47
    %v112 = vunpack.c.l.b16 %v48
    %v113 = vunpack.c.l.b16 %v49
    %v114 = vunpack.c.l.b16 %v50
    %v115 = vunpack.c.l.b16 %v51
    %v116 = vunpack.c.l.b16 %v52
    %v117 = vunpack.c.l.b16 %v53
    %v118 = vunpack.c.l.b16 %v54
    %v119 = vunpack.c.l.b16 %v55
    %v120 = vunpack.c.l.b16 %v56
    %v121 = vunpack.c.l.b16 %v57
    %v122 = vunpack.c.l.b16 %v58
    %v123 = vpack.c.b16 %v92, %v91
    %v124 = vpack.c.b16 %v94, %v93
    %v125 = vpack.c.b16 %v96, %v95
    %v126 = vpack.c.b16 %v98, %v97
    %v127 = vpack.c.b16 %v100, %v99
    %v128 = vpack.c.b16 %v102, %v101
    %v129 = vpack.c.b16 %v104, %v103
    %v130 = vpack.c.b16 %v106, %v105
    %v131 = vpack.c.b16 %v108, %v107
    %v132 = vpack.c.b16 %v110, %v109
    %v133 = vpack.c.b16 %v112, %v111
    %v134 = vpack.c.b16 %v114, %v113
    %v135 = vpack.c.b16 %v116, %v115
    %v136 = vpack.c.b16 %v118, %v117
    %v137 = vpack.c.b16 %v120, %v119
    %v138 = vpack.c.b16 %v122, %v121
    %155 = vmatprep.subr.bf16.mxu0 0
    %156 = vmatpush1.bf16.xpose.msra.mxu0 %v123
    %157 = vmatprep.subr.bf16.mxu0 0
    %158 = vmatpush1.bf16.xpose.msra.mxu0 %v124
    %159 = vmatprep.subr.bf16.mxu0 0
    %160 = vmatpush1.bf16.xpose.msra.mxu0 %v125
    %161 = vmatprep.subr.bf16.mxu0 0
    %162 = vmatpush1.bf16.xpose.msra.mxu0 %v126
    %163 = vmatprep.subr.bf16.mxu0 0
    %164 = vmatpush1.bf16.xpose.msra.mxu0 %v127
    %165 = vmatprep.subr.bf16.mxu0 0
    %166 = vmatpush1.bf16.xpose.msra.mxu0 %v128
    %167 = vmatprep.subr.bf16.mxu0 0
    %168 = vmatpush1.bf16.xpose.msra.mxu0 %v129
    %169 = vmatprep.subr.bf16.mxu0 0
    %170 = vmatpush1.bf16.xpose.msra.mxu0 %v130
    %171 = vmatprep.subr.bf16.mxu0 0
    %172 = vmatpush1.bf16.xpose.msra.mxu0 %v131
    %173 = vmatprep.subr.bf16.mxu0 0
    %174 = vmatpush1.bf16.xpose.msra.mxu0 %v132
    %175 = vmatprep.subr.bf16.mxu0 0
    %176 = vmatpush1.bf16.xpose.msra.mxu0 %v133
    %177 = vmatprep.subr.bf16.mxu0 0
    %178 = vmatpush1.bf16.xpose.msra.mxu0 %v134
    %179 = vmatprep.subr.bf16.mxu0 0
    %180 = vmatpush1.bf16.xpose.msra.mxu0 %v135
    %181 = vmatprep.subr.bf16.mxu0 0
    %182 = vmatpush1.bf16.xpose.msra.mxu0 %v136
    %183 = vmatprep.subr.bf16.mxu0 0
    %184 = vmatpush1.bf16.xpose.msra.mxu0 %v137
    %185 = vmatprep.subr.bf16.mxu0 0
    %186 = vmatpush1.bf16.xpose.msra.mxu0 %v138
    %187 = vmatprep.mubr.bf16.mxu0 0
    %188 = vmatmul.mubr.bf16.gmra.mrb[0].mxu0 %v26
    %v189 = vpop.f32.mrb[0].mxu0
    %v190 = vadd.f32 0.0, %v189
    %v191 = vpop.f32.mrb[0].mxu0
    %v192 = vadd.f32 0.0, %v191
    %v193 = vpop.f32.mrb[0].mxu0
    %v194 = vpop.f32.mrb[0].mxu0
    %195 = vdwg.mxu0
    %s196 = sadd.s32 0, 0
    %s197 = sld [smem:[#allocation3 + %s196]]
    %p198 = scmp.ne.s32.totalorder %s197, 0
    %p199 = scmp.eq.s32.totalorder %s197, 0
    // Predicated region
    $region14: #{arc_margin_forward.1} parent=1 // pred_check
      %p200 = pneg %p199
    $region15: #{arc_margin_forward.1} parent=1 // pred_check_branch
      %202 = sbr.rel (%p200) target = $region17
    $region16: #{arc_margin_forward.1} parent=1 // pred_region
      %203 = vst [vmem:[#allocation4] sm:$0xff] %v190
      %204 = vst [vmem:[#allocation4 + $0x8] sm:$0xff] %v192
    $region17: #{arc_margin_forward.1} parent=1 // pred_fallthru
      _
    // Predicated region
    $region18: #{arc_margin_forward.1} parent=1 // pred_check
      %p205 = pneg %p198
    $region19: #{arc_margin_forward.1} parent=1 // pred_check_branch
      %207 = sbr.rel (%p205) target = $region21
    $region20: #{arc_margin_forward.1} parent=1 // pred_region
      %v208 = vlaneseq
      %v209 = vand.u32 %v208, 127
      %v210 = vadd.s32 %v209, 128
      %s211 = smul.u32 0, 256
      %v212 = vstv %s211
      %v213 = vadd.s32 %v209, %v212
      %v214 = vadd.s32 %v210, %v212
      %v215 = vld [vmem:[%s3] sm:$0xff]
      %216 = vset.pattern.permute.xlu0 0
      %217 = vperm.xlu0 %216, %v215
      %v218 = vpop.permute.xlu0 %217
      %vm219 = vcmp.eq.s32.totalorder %v213, %v218
      %vm220 = vcmp.eq.s32.totalorder %v214, %v218
      %v221 = vsel %vm219, %v190, 0.0
      %v222 = vsel %vm220, %v192, 0.0
      %v223 = vadd.f32 %v221, %v222
      %224 = vadd.xlane.f32.xlu0 %v223
      %v225 = vpop.xlane.xlu0 %224
      %v226 = vmul.f32 %v225, 0.033333335
      %v227 = vmul.f32 %v226, %v226
      %v228 = vsub.f32 1.0, %v227
      %v229 = vmax.f32 %v228, 0.0
      %v230 = vrsqrt.pop %v229
      %v231 = vmul.f32 %v229, %v230
      %vm232 = vcmp.eq.f32.partialorder %v229, inf
      %v233 = vsel %vm232, %v229, %v231
      %vm234 = vcmp.eq.f32.partialorder %v229, 0.0
      %v235 = vand.u32 %v229, 2147483648
      %v236 = vsel %vm234, %v235, %v233
      %v237 = vmul.f32 %v226, 0.7648422
      %v238 = vmul.f32 %v236, 0.64421767
      %v239 = vsub.f32 %v237, %v238
      %v240 = vsub.f32 %v226, -0.7648422
      %vm241 = vcmp.gt.f32.partialorder %v240, 0.0
      %v242 = vsub.f32 %v226, 0.45095238
      %v243 = vsel %vm241, %v239, %v242
      %v244 = vsub.f32 %v243, %v226
      %v245 = vmul.f32 %v244, 30.0
      %v246 = vsel %vm219, %v245, 0.0
      %v247 = vsel %vm220, %v245, 0.0
      %v248 = vadd.f32 %v190, %v246
      %v249 = vadd.f32 %v192, %v247
      %250 = vst [vmem:[#allocation4] sm:$0xff] %v248
      %251 = vst [vmem:[#allocation4 + $0x8] sm:$0xff] %v249
    $region21: #{arc_margin_forward.1} parent=1 // pred_fallthru
      _
    // Predicated region
    $region22: #{arc_margin_forward.1} parent=1 // pred_check
      _
    $region23: #{arc_margin_forward.1} parent=1 // pred_check_branch
      %253 = sbr.rel (0) target = $region25
    $region24: #{arc_margin_forward.1} parent=1 // pred_region
      %s255 = ssub.s32 256, 256
      %256 = vsyncadd [#allocation5], %s255
      %s258 = sshll.u32 [#allocation4], 4
      %s259 = int_to_ptr.vmem [resolvable:$true] %s258
      %261 = dma.vmem_to_hbm [thread:$0]  %s259, 256, %s4, [#allocation5]
    $region25: #{arc_margin_forward.1} parent=1 // pred_fallthru
      _
    // Predicated region
    $region26: #{arc_margin_forward.1} parent=1 // pred_check
      _
    $region27: #{arc_margin_forward.1} parent=1 // pred_check_branch
      %263 = sbr.rel (0) target = $region29
    $region28: #{arc_margin_forward.1} parent=1 // pred_region
      %264 = dma.done [#allocation5], 256
    $region29: #{arc_margin_forward.1} parent=1 // pred_fallthru
      _
    %265 = vsyncpa [#allocation5], 1

</llo_original>
